<compile_context>
chip_gen: v7x
topology: tpu7x:2x2x1
jax: 0.10.0
libtpu: 0.0.40
codegen_flags: <defaults>
</compile_context>

<pallas_src>
import jax
import jax.numpy as jnp
from jax.experimental import pallas as pl
from jax.experimental.pallas import tpu as pltpu


# ----------------------------------------------------------------------------
# small static-shape helpers (plain Python ints; run at trace time)
# ----------------------------------------------------------------------------
def _round_up(n, m):
    return (n + m - 1) // m * m


def _tile_for(dim, cap, unit):
    """Largest multiple-of-`unit` divisor of `dim` that is <= cap; `dim` if it fits."""
    if dim <= cap:
        return dim
    top = max(unit, cap - cap % unit)
    for cand in range(top, unit - 1, -unit):
        if dim % cand == 0:
            return cand
    return unit


def _choose_batch_tiling(B, batch_tile):
    """Return (bt, BP).  Never shrinks bt below 256 for large batches; for small
    batches produces 2 programs so v7x megacore can shard the batch axis."""
    BP0 = _round_up(max(B, 1), 16)                  # bf16 sublane granularity
    bt_cap = max(16, _round_up(batch_tile, 16))
    if BP0 <= bt_cap:
        if BP0 >= 32:
            bt = _round_up((BP0 + 1) // 2, 16)      # 2 programs for v7x megacore
            return bt, 2 * bt
        return BP0, BP0                             # tiny batch: 1 program
    lo = min(256, bt_cap)
    for cand in range(bt_cap, lo - 1, -16):         # exact divisor >= 256: no padding
        if BP0 % cand == 0:
            return cand, BP0
    return lo, _round_up(BP0, lo)                   # else pad; bt stays >= 256


# ----------------------------------------------------------------------------
# one-time parameter preprocessing (cache the result; do NOT redo per forward)
# ----------------------------------------------------------------------------
def prepare_duck_params(w1, b1, w2, b2, *, param_dtype=jnp.bfloat16, k_tile=2048):
    """Fuse [W1|W2] -> (HP, OP) lane-dense weight and [b1|b2] -> (1, OP) f32 bias."""
    H, O1 = w1.shape
    O2 = w2.shape[1]
    O_fused = O1 + O2
    OP = _round_up(O_fused, 128)                    # unmasked vst (lane-dense output)
    k_cap = max(128, k_tile - k_tile % 128)
    HP = H if H <= k_cap else _round_up(H, 128)     # pad K only when it must be tiled

    w = jnp.zeros((HP, OP), dtype=param_dtype)
    w = w.at[:H, :O1].set(w1.astype(param_dtype))
    w = w.at[:H, O1:O_fused].set(w2.astype(param_dtype))
    b = jnp.zeros((1, OP), dtype=jnp.float32)
    b = b.at[:, :O1].set(b1.reshape(1, O1).astype(jnp.float32))
    b = b.at[:, O1:O_fused].set(b2.reshape(1, O2).astype(jnp.float32))
    return {"w": w, "b": b, "o1": O1, "o2": O2, "h": H}


# ----------------------------------------------------------------------------
# kernel: fused matmul for both sub-models, f32 accumulate, fused bias add
# ----------------------------------------------------------------------------
def duck_fused_kernel(x_ref, w_ref, b_ref, y_ref, acc_ref):
    k = pl.program_id(2)

    @pl.when(k == 0)
    def _init():
        acc_ref[...] = jnp.zeros_like(acc_ref)

    acc_ref[...] += jnp.dot(x_ref[...], w_ref[...],
                            preferred_element_type=jnp.float32)

    @pl.when(k == pl.num_programs(2) - 1)
    def _finalize():
        y_ref[...] = (acc_ref[...] + b_ref[...]).astype(y_ref.dtype)


# ----------------------------------------------------------------------------
# forward: DuckModel semantics — returns (linear1(x), linear2(x))
# ----------------------------------------------------------------------------
def duck_forward(x, params, *, batch_tile=512, col_tile=1024, k_tile=2048,
                 out_dtype=jnp.float32, x_buffer_count=None, return_fused=False):
    w_fused, b_fused = params["w"], params["b"]
    O1, O2, H = params["o1"], params["o2"], params["h"]
    B, Hx = x.shape
    assert Hx == H
    HP, OP = w_fused.shape

    # --- tiling (all static Python arithmetic) ------------------------------
    bt, BP = _choose_batch_tiling(B, batch_tile)
    tn = _tile_for(OP, max(128, col_tile - col_tile % 128), 128)
    tk = _tile_for(HP, max(128, k_tile - k_tile % 128), 128)
    grid = (BP // bt, OP // tn, HP // tk)

    # --- activations: cast to weight dtype, pad only if needed (fuses in jit)
    xb = x if x.dtype == w_fused.dtype else x.astype(w_fused.dtype)
    if BP != B or HP != H:
        xb = jnp.pad(xb, ((0, BP - B), (0, HP - H)))

    # --- VMEM budget: raise the scoped limit only when we'd exceed v5e's 16 MiB
    in_b = jnp.dtype(w_fused.dtype).itemsize
    out_b = jnp.dtype(out_dtype).itemsize
    x_bufs = 2 if x_buffer_count is None else x_buffer_count
    vmem_need = (x_bufs * bt * tk * in_b          # x pipeline buffers
                 + 2 * tk * tn * in_b             # weight (double-buffered)
                 + 2 * tn * 4                     # bias
                 + 2 * bt * tn * out_b            # output tile
                 + bt * tn * 4)                   # f32 accumulator scratch
    vmem_limit = None
    if 2 * vmem_need > (16 << 20):                # beyond the v5e default scoped VMEM
        vmem_limit = min(2 * vmem_need, 60 << 20)  # headroom, under v7x's 64 MiB phys

    # --- BlockSpecs ----------------------------------------------------------
    if x_buffer_count is None:
        x_spec = pl.BlockSpec((bt, tk), lambda i, j, k: (i, k))
    else:  # sweep hook: deeper buffering for the short-compute, mem-bound regime
        x_spec = pl.BlockSpec((bt, tk), lambda i, j, k: (i, k),
                              pipeline_mode=pl.Buffered(x_buffer_count))
    w_spec = pl.BlockSpec((tk, tn), lambda i, j, k: (k, j))
    b_spec = pl.BlockSpec((1, tn), lambda i, j, k: (0, j))
    y_spec = pl.BlockSpec((bt, tn), lambda i, j, k: (i, j))

    flops = 2 * BP * HP * OP + BP * OP
    bytes_accessed = BP * HP * in_b + HP * OP * in_b + OP * 4 + BP * OP * out_b

    y_fused = pl.pallas_call(
        duck_fused_kernel,
        out_shape=jax.ShapeDtypeStruct((BP, OP), out_dtype),
        grid_spec=pltpu.PrefetchScalarGridSpec(
            num_scalar_prefetch=0,
            grid=grid,
            in_specs=[x_spec, w_spec, b_spec],
            out_specs=y_spec,
            scratch_shapes=[pltpu.VMEM((bt, tn), jnp.float32)],
        ),
        compiler_params=pltpu.CompilerParams(
            dimension_semantics=("parallel", "parallel", "arbitrary"),
            vmem_limit_bytes=vmem_limit,
        ),
        cost_estimate=pl.CostEstimate(
            flops=flops, transcendentals=0, bytes_accessed=bytes_accessed),
    )(xb, w_fused, b_fused)

    if return_fused:
        # Consumers that accept the fused slab avoid the per-output slice passes.
        return y_fused[:B], (0, O1, O1 + O2)

    # DuckModel tuple semantics; under jit these slices fuse into the consumer.
    y1 = y_fused[:B, :O1]
    y2 = y_fused[:B, O1:O1 + O2]
    return y1, y2


# TODO(synk): DuckModel is a generic container — arbitrary (non-Linear)
# sub-modules would each need their own kernel; only the 2-Linear instantiation
# is implemented (and fused) here.

if __name__ == "__main__":
    # Small shapes: batch=8, hidden=32; sub-model 0: Linear(32->32),
    # sub-model 1: Linear(32->64).
    B, H, O1, O2 = 8, 32, 32, 64

    key = jax.random.PRNGKey(0)
    kx, kw1, kb1, kw2, kb2 = jax.random.split(key, 5)

    x = jax.random.normal(kx, (B, H), dtype=jnp.float32)
    # Deterministic parameter init (stand-in for nn.Linear weights), (in, out).
    w1 = jax.random.normal(kw1, (H, O1), dtype=jnp.float32) * 0.05
    b1 = jax.random.normal(kb1, (1, O1), dtype=jnp.float32) * 0.05
    w2 = jax.random.normal(kw2, (H, O2), dtype=jnp.float32) * 0.05
    b2 = jax.random.normal(kb2, (1, O2), dtype=jnp.float32) * 0.05

    # One-time fusion of the DuckModel parameters (cached across forward calls).
    params = prepare_duck_params(w1, b1, w2, b2)

    fwd = jax.jit(lambda xx: duck_forward(xx, params))
    y1, y2 = fwd(x)
    jax.block_until_ready((y1, y2))

    # Reference (plain JAX f32), mirroring DuckModel.forward tuple semantics.
    # Tolerances loosened for the bf16 matmul operands (explicit precision choice).
    ref1 = x @ w1 + b1
    ref2 = x @ w2 + b2
    assert y1.shape == (B, O1) and y2.shape == (B, O2)
    assert jnp.allclose(y1, ref1, atol=2e-2, rtol=2e-2)
    assert jnp.allclose(y2, ref2, atol=2e-2, rtol=2e-2)

    print("KERNEL_OK")
</pallas_src>

<mosaic_0001>
module attributes {stable_mosaic.version = 11 : i64} {
  func.func @duck_fused_kernel(%arg0: i32, %arg1: i32, %arg2: i32, %arg3: memref<16x32xbf16, #tpu.memory_space<vmem>>, %arg4: memref<32x128xbf16, #tpu.memory_space<vmem>>, %arg5: memref<1x128xf32, #tpu.memory_space<vmem>>, %arg6: memref<16x128xf32, #tpu.memory_space<vmem>>, %arg7: memref<16x128xf32, #tpu.memory_space<vmem>>) attributes {dimension_semantics = [#tpu.dimension_semantics<parallel>, #tpu.dimension_semantics<parallel>, #tpu.dimension_semantics<arbitrary>], iteration_bounds = array<i64: 1, 1, 1>, scalar_prefetch = 0 : i64, scratch_operands = 1 : i64, tpu.core_type = #tpu.core_type<tc>, window_params = [{transform_indices = @transform_0, window_bounds = array<i64: 16, 32>}, {transform_indices = @transform_1, window_bounds = array<i64: 32, 128>}, {transform_indices = @transform_2, window_bounds = array<i64: 1, 128>}, {transform_indices = @transform_3, window_bounds = array<i64: 16, 128>}]} {
    %c0_i32 = arith.constant 0 : i32
    %0 = arith.cmpi eq, %arg2, %c0_i32 : i32
    %1 = arith.extui %0 : i1 to i32
    %c0_i32_0 = arith.constant 0 : i32
    %2 = arith.cmpi ne, %1, %c0_i32_0 : i32
    scf.if %2 {
      %cst_10 = arith.constant 0.000000e+00 : f32
      %12 = vector.broadcast %cst_10 : f32 to vector<16x128xf32>
      %c0_11 = arith.constant 0 : index
      %c0_12 = arith.constant 0 : index
      %13 = vector.load %arg7[%c0_11, %c0_12] : memref<16x128xf32, #tpu.memory_space<vmem>>, vector<16x128xf32>
      tpu.vector_store %arg7[%c0_11, %c0_12], %12 {strides = array<i32>} : memref<16x128xf32, #tpu.memory_space<vmem>>, vector<16x128xf32>,
    } else {
    }
    %c0 = arith.constant 0 : index
    %c0_1 = arith.constant 0 : index
    %3 = vector.load %arg7[%c0, %c0_1] : memref<16x128xf32, #tpu.memory_space<vmem>>, vector<16x128xf32>
    %c0_2 = arith.constant 0 : index
    %c0_3 = arith.constant 0 : index
    %4 = vector.load %arg3[%c0_2, %c0_3] : memref<16x32xbf16, #tpu.memory_space<vmem>>, vector<16x32xbf16>
    %c0_4 = arith.constant 0 : index
    %c0_5 = arith.constant 0 : index
    %5 = vector.load %arg4[%c0_4, %c0_5] : memref<32x128xbf16, #tpu.memory_space<vmem>>, vector<32x128xbf16>
    %cst = arith.constant dense<0.000000e+00> : vector<16x128xf32>
    %6 = tpu.matmul %4, %5, %cst {dimension_numbers = #tpu.dot_dimension_numbers<[1], [0], [0], [1], [0, 0, 1, 1], [], []>} : vector<16x32xbf16>, vector<32x128xbf16>, vector<16x128xf32> -> vector<16x128xf32>
    %7 = arith.addf %3, %6 : vector<16x128xf32>
    %c0_6 = arith.constant 0 : index
    %c0_7 = arith.constant 0 : index
    %8 = vector.load %arg7[%c0_6, %c0_7] : memref<16x128xf32, #tpu.memory_space<vmem>>, vector<16x128xf32>
    tpu.vector_store %arg7[%c0_6, %c0_7], %7 {strides = array<i32>} : memref<16x128xf32, #tpu.memory_space<vmem>>, vector<16x128xf32>,
    %c0_i32_8 = arith.constant 0 : i32
    %9 = arith.cmpi eq, %arg2, %c0_i32_8 : i32
    %10 = arith.extui %9 : i1 to i32
    %c0_i32_9 = arith.constant 0 : i32
    %11 = arith.cmpi ne, %10, %c0_i32_9 : i32
    scf.if %11 {
      %c0_10 = arith.constant 0 : index
      %c0_11 = arith.constant 0 : index
      %12 = vector.load %arg7[%c0_10, %c0_11] : memref<16x128xf32, #tpu.memory_space<vmem>>, vector<16x128xf32>
      %c0_12 = arith.constant 0 : index
      %c0_13 = arith.constant 0 : index
      %13 = vector.load %arg5[%c0_12, %c0_13] : memref<1x128xf32, #tpu.memory_space<vmem>>, vector<1x128xf32>
      %14 = vector.broadcast %13 : vector<1x128xf32> to vector<16x128xf32>
      %15 = arith.addf %12, %14 : vector<16x128xf32>
      %c0_14 = arith.constant 0 : index
      %c0_15 = arith.constant 0 : index
      %16 = vector.load %arg6[%c0_14, %c0_15] : memref<16x128xf32, #tpu.memory_space<vmem>>, vector<16x128xf32>
      tpu.vector_store %arg6[%c0_14, %c0_15], %15 {strides = array<i32>} : memref<16x128xf32, #tpu.memory_space<vmem>>, vector<16x128xf32>,
    } else {
    }
    return
  }
  func.func @transform_0(%arg0: i32, %arg1: i32, %arg2: i32) -> (i32, i32) {
    %c0_i32 = arith.constant 0 : i32
    return %arg0, %arg2 : i32, i32
  }
  func.func @transform_1(%arg0: i32, %arg1: i32, %arg2: i32) -> (i32, i32) {
    %c0_i32 = arith.constant 0 : i32
    return %arg2, %arg1 : i32, i32
  }
  func.func @transform_2(%arg0: i32, %arg1: i32, %arg2: i32) -> (i32, i32) {
    %c0_i32 = arith.constant 0 : i32
    %c0_i32_0 = arith.constant 0 : i32
    return %c0_i32, %arg1 : i32, i32
  }
  func.func @transform_3(%arg0: i32, %arg1: i32, %arg2: i32) -> (i32, i32) {
    %c0_i32 = arith.constant 0 : i32
    return %arg0, %arg1 : i32, i32
  }
}

</mosaic_0001>

<llo_original>
// kernel: _lambda_.1
$region0: #{_lambda_.1}
  #allocation0 [shape = 'u32[]', space=smem, size = 0x4, offset = 0x4, fixed_abs, tag = 'smem constant byte address 0x4 - core index']
  #allocation1 [shape = 'u32[144,128]{1,0:T(1,128)}', space=vmem, size = 0x12000, scoped, tag = 'internal scratch']
  #allocation2 [shape = 'f32[16,128]{1,0:T(8,128)}', space=vmem, size = 0x2000, scoped, tag = 'scratch operand']
  %s0 = inlined_call_operand.vmem [shape: bf16[16,32], index: 0, kind: input, shape index: {}]
  %s1 = inlined_call_operand.vmem [shape: bf16[32,128], index: 1, kind: input, shape index: {}]
  %s2 = inlined_call_operand.vmem [shape: f32[1,128], index: 2, kind: input, shape index: {}]
  %s3 = inlined_call_operand.vmem [shape: f32[16,128], index: 3, kind: output, shape index: {}]
  %s4 = sld [smem:[#allocation0]]
  $region30: #{_lambda_.1} parent=0
    _
  %s6 = ssub.s32 1, %s4
  %s7 = scalar_select 0, %s6, %s4
  // Predicated region
  $region2: #{_lambda_.1} parent=0 // pred_check
    _
  $region3: #{_lambda_.1} parent=0 // pred_check_branch
    %9 = sbr.rel (0) target = $region5
  $region4: #{_lambda_.1} parent=0 // pred_region
    _
  $region5: #{_lambda_.1} parent=0 // pred_fallthru
    _
  // Predicated region
  $region6: #{_lambda_.1} parent=0 // pred_check
    _
  $region7: #{_lambda_.1} parent=0 // pred_check_branch
    %11 = sbr.rel (0) target = $region9
  $region8: #{_lambda_.1} parent=0 // pred_region
    _
  $region9: #{_lambda_.1} parent=0 // pred_fallthru
    _
  // Predicated region
  $region10: #{_lambda_.1} parent=0 // pred_check
    _
  $region11: #{_lambda_.1} parent=0 // pred_check_branch
    %13 = sbr.rel (0) target = $region13
  $region12: #{_lambda_.1} parent=0 // pred_region
    _
  $region13: #{_lambda_.1} parent=0 // pred_fallthru
    _
  %p15 = scmp.eq.s32.totalorder 0, 0
  // Predicated region
  $region14: #{_lambda_.1} parent=0 // pred_check
    %p16 = pneg %p15
  $region15: #{_lambda_.1} parent=0 // pred_check_branch
    %18 = sbr.rel (%p16) target = $region17
  $region16: #{_lambda_.1} parent=0 // pred_region
    %19 = vst [vmem:[#allocation2] sm:$0xff] 0.0
    %20 = vst [vmem:[#allocation2 + $0x8] sm:$0xff] 0.0
  $region17: #{_lambda_.1} parent=0 // pred_fallthru
    _
  %v21 = vld [vmem:[#allocation2] sm:$0xff]
  %v22 = vld [vmem:[#allocation2 + $0x8] sm:$0xff]
  %v23 = vld [vmem:[%s0] sm:$0xf]
  %v24 = vld [vmem:[%s0 + $0x4] sm:$0xf]
  %v25 = vld [vmem:[%s1] sm:$0xf]
  %v26 = vld [vmem:[%s1 + $0x4] sm:$0xf]
  %v27 = vld [vmem:[%s1 + $0x8] sm:$0xf]
  %v28 = vld [vmem:[%s1 + $0xc] sm:$0xf]
  %v31 = vunpack.c.l.b16 %v23
  %v32 = vunpack.c.l.b16 %v24
  %v33 = vpack.c.b16 %v32, %v31
  %v38 = vunpack.c.l.b16 %v25
  %v39 = vunpack.c.l.b16 %v26
  %v40 = vunpack.c.l.b16 %v27
  %v41 = vunpack.c.l.b16 %v28
  %v42 = vpack.c.b16 %v39, %v38
  %v43 = vpack.c.b16 %v41, %v40
  %vm46 = vcmask 261120
  %v48 = vsel %vm46, %v33, 0
  %50 = vmatprep.subr.bf16.mxu0 0
  %51 = vmatpush1.bf16.msra.mxu0 %v42
  %52 = vmatprep.subr.bf16.mxu0 0
  %53 = vmatpush1.bf16.msra.mxu0 %v43
  %54 = vmatprep.subr.bf16.mxu0 0
  %55 = vmatpush1.bf16.msra.mxu0 0
  %56 = vmatprep.subr.bf16.mxu0 0
  %57 = vmatpush1.bf16.msra.mxu0 0
  %58 = vmatprep.subr.bf16.mxu0 0
  %59 = vmatpush1.bf16.msra.mxu0 0
  %60 = vmatprep.subr.bf16.mxu0 0
  %61 = vmatpush1.bf16.msra.mxu0 0
  %62 = vmatprep.subr.bf16.mxu0 0
  %63 = vmatpush1.bf16.msra.mxu0 0
  %64 = vmatprep.subr.bf16.mxu0 0
  %65 = vmatpush1.bf16.msra.mxu0 0
  %66 = vmatprep.subr.bf16.mxu0 0
  %67 = vmatpush1.bf16.msra.mxu0 0
  %68 = vmatprep.subr.bf16.mxu0 0
  %69 = vmatpush1.bf16.msra.mxu0 0
  %70 = vmatprep.subr.bf16.mxu0 0
  %71 = vmatpush1.bf16.msra.mxu0 0
  %72 = vmatprep.subr.bf16.mxu0 0
  %73 = vmatpush1.bf16.msra.mxu0 0
  %74 = vmatprep.subr.bf16.mxu0 0
  %75 = vmatpush1.bf16.msra.mxu0 0
  %76 = vmatprep.subr.bf16.mxu0 0
  %77 = vmatpush1.bf16.msra.mxu0 0
  %78 = vmatprep.subr.bf16.mxu0 0
  %79 = vmatpush1.bf16.msra.mxu0 0
  %80 = vmatprep.subr.bf16.mxu0 0
  %81 = vmatpush1.bf16.msra.mxu0 0
  %82 = vmatprep.mubr.bf16.mxu0 0
  %83 = vmatmul.mubr.bf16.gmra.mrb[0].mxu0 %v48
  %v84 = vpop.f32.mrb[0].mxu0
  %v85 = vadd.f32 0.0, %v84
  %v86 = vpop.f32.mrb[0].mxu0
  %v87 = vpop.f32.mrb[0].mxu0
  %v88 = vadd.f32 0.0, %v87
  %v89 = vpop.f32.mrb[0].mxu0
  %90 = vdwg.mxu0
  %v91 = vadd.f32 %v21, %v85
  %v92 = vadd.f32 %v22, %v88
  %93 = vst [vmem:[#allocation2] sm:$0xff] %v91
  %94 = vst [vmem:[#allocation2 + $0x8] sm:$0xff] %v92
  // Predicated region
  $region18: #{_lambda_.1} parent=0 // pred_check
    %p95 = pneg %p15
  $region19: #{_lambda_.1} parent=0 // pred_check_branch
    %97 = sbr.rel (%p95) target = $region21
  $region20: #{_lambda_.1} parent=0 // pred_region
    %v98 = vld [vmem:[#allocation2] sm:$0xff]
    %v99 = vld [vmem:[#allocation2 + $0x8] sm:$0xff]
    %v100 = vld [vmem:[%s2] sm:$0x1]
    %v102 = vlaneseq
    %v103 = vshrl.u32 %v102, 7
    %v104 = vsub.s32 0, %v103
    %v105 = vrot.slane %v100, %v104
    %v107 = vadd.f32 %v98, %v105
    %v108 = vadd.f32 %v99, %v105
    %109 = vst [vmem:[%s3] sm:$0xff] %v107
    %110 = vst [vmem:[%s3 + $0x8] sm:$0xff] %v108
  $region21: #{_lambda_.1} parent=0 // pred_fallthru
    _
  // Predicated region
  $region22: #{_lambda_.1} parent=0 // pred_check
    _
  $region23: #{_lambda_.1} parent=0 // pred_check_branch
    %112 = sbr.rel (0) target = $region25
  $region24: #{_lambda_.1} parent=0 // pred_region
    _
  $region25: #{_lambda_.1} parent=0 // pred_fallthru
    _
  // Predicated region
  $region26: #{_lambda_.1} parent=0 // pred_check
    _
  $region27: #{_lambda_.1} parent=0 // pred_check_branch
    %114 = sbr.rel (0) target = $region29
  $region28: #{_lambda_.1} parent=0 // pred_region
    _
  $region29: #{_lambda_.1} parent=0 // pred_fallthru
    _

</llo_original>
